<compile_context>
chip_gen: v7x
topology: tpu7x:2x2x1
jax: 0.10.0
libtpu: 0.0.40
codegen_flags: <defaults>
</compile_context>

<pallas_src>
import functools

import jax
import jax.numpy as jnp
from jax import lax
from jax.experimental import pallas as pl
from jax.experimental.pallas import tpu as pltpu

BN_EPS = 1e-5
NUM_TRUNK_LAYERS = 4
PACKED_WIDTH = 128  # lane-dense padded feature width


def encoder_kernel(x_ref, w_ref, vec_ref, out_ref, *, latent_dim, input_dim):
    """Fused single-block forward pass.

    x_ref   : (batch, D)   lanes [0, input_dim) = x, [input_dim, input_dim+latent) = eps, rest 0
    w_ref   : (5, D, D)    zero-padded weights (4 trunk layers + fused [mu|log_var] head)
    vec_ref : (9, D)       rows 0-3 gamma, rows 4-7 beta, row 8 fused head bias
    out_ref : (batch, D)   packed [mu | log_var | z | 0-pad]
    """
    h = x_ref[...]

    # --- trunk: 4 x (Linear -> BatchNorm1d(training batch stats) -> ReLU) ---
    # Linear bias omitted: it is mathematically cancelled by the BN mean subtraction.
    for i in range(NUM_TRUNK_LAYERS):
        h = jnp.dot(h, w_ref[i], preferred_element_type=jnp.float32)
        mean = jnp.mean(h, axis=0, keepdims=True)
        centered = h - mean
        var = jnp.mean(centered * centered, axis=0, keepdims=True)
        # gamma/beta are zero on padded lanes, so padded lanes stay exactly 0.
        scale = vec_ref[i:i + 1, :] * lax.rsqrt(var + BN_EPS)
        beta = vec_ref[NUM_TRUNK_LAYERS + i:NUM_TRUNK_LAYERS + i + 1, :]
        h = jnp.maximum(centered * scale + beta, 0.0)

    # --- fused heads: one matmul producing [mu | log_var | 0...] ---
    head = jnp.dot(h, w_ref[4], preferred_element_type=jnp.float32) + vec_ref[8:9, :]
    head = jnp.maximum(head, 0.0)          # ReLU on both heads (as in the module)

    mu = head[:, :latent_dim]
    log_var = head[:, latent_dim:2 * latent_dim]

    # --- reparameterize: z = eps * exp(log_var / 2) + mu ---
    eps = x_ref[:, input_dim:input_dim + latent_dim]
    z = eps * jnp.exp(log_var * 0.5) + mu

    # [mu | log_var] are already contiguous in lanes 0..2L of `head` (and lanes
    # >= 2L of `head` are exact zeros): one full-width lane-dense store, then a
    # small overwrite placing z at lanes [2L, 3L).
    out_ref[...] = head
    out_ref[:, 2 * latent_dim:3 * latent_dim] = z


def init_params(key, input_dim, hidden_dim, latent_dim):
    """PyTorch-default-style init (uniform fan-in bound). Returns a flat dict."""
    dims = [input_dim] + list(hidden_dim) + [latent_dim]
    params = {}
    k = key
    for i in range(NUM_TRUNK_LAYERS):
        fan_in, fan_out = dims[i], dims[i + 1]
        k, kw, kb = jax.random.split(k, 3)
        bound = fan_in ** -0.5
        params[f"w{i}"] = jax.random.uniform(kw, (fan_in, fan_out), jnp.float32, -bound, bound)
        # Trunk biases are generated for fidelity but NOT used by the kernel:
        # they are exactly cancelled by the training-mode BatchNorm that follows.
        params[f"b{i}"] = jax.random.uniform(kb, (fan_out,), jnp.float32, -bound, bound)
        params[f"gamma{i}"] = jnp.ones((fan_out,), jnp.float32)
        params[f"beta{i}"] = jnp.zeros((fan_out,), jnp.float32)
    for name in ("mu", "lv"):
        k, kw, kb = jax.random.split(k, 3)
        bound = latent_dim ** -0.5
        params[f"w_{name}"] = jax.random.uniform(
            kw, (latent_dim, latent_dim), jnp.float32, -bound, bound)
        params[f"b_{name}"] = jax.random.uniform(
            kb, (latent_dim,), jnp.float32, -bound, bound)
    return params


def pack_params(params, input_dim, hidden_dim, latent_dim, packed_width=PACKED_WIDTH):
    """Pack all parameters into one padded weight slab and one vector slab.

    IMPORTANT: gamma/beta MUST remain zero on padded lanes (lanes >= layer width).
    Padded lanes have var == 0, so rsqrt(eps) ~ 316 appears there — it is only
    harmless because it multiplies gamma == 0. Do not initialize gamma to ones
    across the full padded width.
    """
    dims = [input_dim] + list(hidden_dim) + [latent_dim]
    d = int(packed_width)
    assert d >= max(max(dims), 2 * latent_dim), "packed width too small for layers"
    assert d >= input_dim + latent_dim, "packed width too small to fold eps into x"

    w_slab = jnp.zeros((5, d, d), jnp.float32)
    vec_slab = jnp.zeros((9, d), jnp.float32)
    for i in range(NUM_TRUNK_LAYERS):
        w_slab = w_slab.at[i, :dims[i], :dims[i + 1]].set(params[f"w{i}"])
        vec_slab = vec_slab.at[i, :dims[i + 1]].set(params[f"gamma{i}"])
        vec_slab = vec_slab.at[NUM_TRUNK_LAYERS + i, :dims[i + 1]].set(params[f"beta{i}"])

    # Fuse mu / log_var head weights and biases along the output dim.
    w_head = jnp.concatenate([params["w_mu"], params["w_lv"]], axis=1)   # (latent, 2*latent)
    b_head = jnp.concatenate([params["b_mu"], params["b_lv"]], axis=0)   # (2*latent,)
    w_slab = w_slab.at[4, :latent_dim, :2 * latent_dim].set(w_head)
    vec_slab = vec_slab.at[8, :2 * latent_dim].set(b_head)
    return w_slab, vec_slab


@functools.partial(jax.jit, static_argnames=("latent_dim",))
def encoder_forward(x, eps, w_slab, vec_slab, *, latent_dim):
    batch, in_dim = x.shape
    d = w_slab.shape[1]
    # Fold eps into the padded x slab: lanes [0,in_dim)=x, [in_dim,in_dim+latent)=eps.
    # The eps lanes are ignored by the first matmul (w_slab[0] rows >= in_dim are 0).
    tail = d - in_dim - latent_dim
    x_slab = jnp.concatenate(
        [x, eps, jnp.zeros((batch, tail), x.dtype)], axis=1)

    vmem = pl.BlockSpec(memory_space=pltpu.MemorySpace.VMEM)
    packed = pl.pallas_call(
        functools.partial(encoder_kernel, latent_dim=latent_dim, input_dim=in_dim),
        out_shape=jax.ShapeDtypeStruct((batch, d), jnp.float32),
        in_specs=[vmem, vmem, vmem],
        out_specs=vmem,
    )(x_slab, w_slab, vec_slab)

    mu = packed[:, :latent_dim]
    log_var = packed[:, latent_dim:2 * latent_dim]
    z = packed[:, 2 * latent_dim:3 * latent_dim]
    return z, mu, log_var


def encoder_reference(x, eps, params, latent_dim):
    """Pure-JAX reference (keeps the trunk biases, validating the BN cancellation)."""
    hp = lax.Precision.HIGHEST
    h = x
    for i in range(NUM_TRUNK_LAYERS):
        h = jnp.dot(h, params[f"w{i}"], precision=hp) + params[f"b{i}"]
        mean = jnp.mean(h, axis=0, keepdims=True)
        var = jnp.mean((h - mean) ** 2, axis=0, keepdims=True)
        h = (h - mean) / jnp.sqrt(var + BN_EPS)
        h = jnp.maximum(h * params[f"gamma{i}"] + params[f"beta{i}"], 0.0)
    mu = jnp.maximum(jnp.dot(h, params["w_mu"], precision=hp) + params["b_mu"], 0.0)
    log_var = jnp.maximum(jnp.dot(h, params["w_lv"], precision=hp) + params["b_lv"], 0.0)
    z = eps * jnp.exp(log_var * 0.5) + mu
    return z, mu, log_var


if __name__ == "__main__":
    # Small shapes consistent with the module: batch=8, input_dim=32,
    # hidden_dim=(64, 48, 32), latent_dim=16.
    batch = 8
    input_dim = 32
    hidden_dim = (64, 48, 32)
    latent_dim = 16

    key = jax.random.PRNGKey(0)
    k_x, k_eps, k_p = jax.random.split(key, 3)

    x = jax.random.normal(k_x, (batch, input_dim), dtype=jnp.float32)
    # epsilon for reparameterize (torch.randn_like equivalent), generated outside
    # the kernel for determinism.
    eps = jax.random.normal(k_eps, (batch, latent_dim), dtype=jnp.float32)

    params = init_params(k_p, input_dim, hidden_dim, latent_dim)
    w_slab, vec_slab = pack_params(params, input_dim, hidden_dim, latent_dim)

    z, mu, log_var = encoder_forward(x, eps, w_slab, vec_slab, latent_dim=latent_dim)
    jax.block_until_ready((z, mu, log_var))

    assert z.shape == (batch, latent_dim)
    assert mu.shape == (batch, latent_dim)
    assert log_var.shape == (batch, latent_dim)
    assert bool(jnp.all(jnp.isfinite(z)))
    assert bool(jnp.all(jnp.isfinite(mu)))
    assert bool(jnp.all(jnp.isfinite(log_var)))

    # Compare against the pure-JAX reference. Loose tolerance covers MXU vs XLA
    # f32 matmul precision differences and the (exact-in-math) bias cancellation.
    z_ref, mu_ref, lv_ref = encoder_reference(x, eps, params, latent_dim)
    assert float(jnp.max(jnp.abs(z - z_ref))) < 5e-2
    assert float(jnp.max(jnp.abs(mu - mu_ref))) < 5e-2
    assert float(jnp.max(jnp.abs(log_var - lv_ref))) < 5e-2

    print("KERNEL_OK")
</pallas_src>

<mosaic_0001>
module attributes {stable_mosaic.version = 11 : i64} {
  func.func @encoder_kernel(%arg0: memref<8x128xf32, #tpu.memory_space<vmem>>, %arg1: memref<5x128x128xf32, #tpu.memory_space<vmem>>, %arg2: memref<9x128xf32, #tpu.memory_space<vmem>>, %arg3: memref<8x128xf32, #tpu.memory_space<vmem>>) attributes {dimension_semantics = [], scalar_prefetch = 0 : i64, scratch_operands = 0 : i64, tpu.core_type = #tpu.core_type<tc>} {
    %c0 = arith.constant 0 : index
    %c0_0 = arith.constant 0 : index
    %0 = vector.load %arg0[%c0, %c0_0] : memref<8x128xf32, #tpu.memory_space<vmem>>, vector<8x128xf32>
    %c0_1 = arith.constant 0 : index
    %c0_2 = arith.constant 0 : index
    %c0_3 = arith.constant 0 : index
    %1 = vector.load %arg1[%c0_1, %c0_2, %c0_3] : memref<5x128x128xf32, #tpu.memory_space<vmem>>, vector<1x128x128xf32>
    %2 = vector.shape_cast %1 : vector<1x128x128xf32> to vector<128x128xf32>
    %cst = arith.constant dense<0.000000e+00> : vector<8x128xf32>
    %3 = tpu.matmul %0, %2, %cst {dimension_numbers = #tpu.dot_dimension_numbers<[1], [0], [0], [1], [0, 0, 1, 1], [], []>} : vector<8x128xf32>, vector<128x128xf32>, vector<8x128xf32> -> vector<8x128xf32>
    %cst_4 = arith.constant dense<0.000000e+00> : vector<128xf32>
    %4 = vector.multi_reduction <add>, %3, %cst_4 [0] : vector<8x128xf32> to vector<128xf32>
    %5 = vector.shape_cast %4 : vector<128xf32> to vector<1x128xf32>
    %cst_5 = arith.constant 8.000000e+00 : f32
    %6 = vector.broadcast %cst_5 : f32 to vector<1x128xf32>
    %7 = arith.divf %5, %6 : vector<1x128xf32>
    %8 = vector.broadcast %7 : vector<1x128xf32> to vector<8x128xf32>
    %9 = arith.subf %3, %8 : vector<8x128xf32>
    %10 = arith.mulf %9, %9 : vector<8x128xf32>
    %cst_6 = arith.constant dense<0.000000e+00> : vector<128xf32>
    %11 = vector.multi_reduction <add>, %10, %cst_6 [0] : vector<8x128xf32> to vector<128xf32>
    %12 = vector.shape_cast %11 : vector<128xf32> to vector<1x128xf32>
    %cst_7 = arith.constant 8.000000e+00 : f32
    %13 = vector.broadcast %cst_7 : f32 to vector<1x128xf32>
    %14 = arith.divf %12, %13 : vector<1x128xf32>
    %c0_8 = arith.constant 0 : index
    %c0_9 = arith.constant 0 : index
    %15 = vector.load %arg2[%c0_8, %c0_9] : memref<9x128xf32, #tpu.memory_space<vmem>>, vector<1x128xf32>
    %cst_10 = arith.constant 9.99999974E-6 : f32
    %16 = vector.broadcast %cst_10 : f32 to vector<1x128xf32>
    %17 = arith.addf %14, %16 : vector<1x128xf32>
    %18 = math.rsqrt %17 : vector<1x128xf32>
    %19 = arith.mulf %15, %18 : vector<1x128xf32>
    %c4 = arith.constant 4 : index
    %c0_11 = arith.constant 0 : index
    %20 = vector.load %arg2[%c4, %c0_11] : memref<9x128xf32, #tpu.memory_space<vmem>>, vector<1x128xf32>
    %21 = vector.broadcast %19 : vector<1x128xf32> to vector<8x128xf32>
    %22 = arith.mulf %9, %21 : vector<8x128xf32>
    %23 = vector.broadcast %20 : vector<1x128xf32> to vector<8x128xf32>
    %24 = arith.addf %22, %23 : vector<8x128xf32>
    %cst_12 = arith.constant 0.000000e+00 : f32
    %25 = vector.broadcast %cst_12 : f32 to vector<8x128xf32>
    %26 = arith.maximumf %24, %25 : vector<8x128xf32>
    %c1 = arith.constant 1 : index
    %c0_13 = arith.constant 0 : index
    %c0_14 = arith.constant 0 : index
    %27 = vector.load %arg1[%c1, %c0_13, %c0_14] : memref<5x128x128xf32, #tpu.memory_space<vmem>>, vector<1x128x128xf32>
    %28 = vector.shape_cast %27 : vector<1x128x128xf32> to vector<128x128xf32>
    %cst_15 = arith.constant dense<0.000000e+00> : vector<8x128xf32>
    %29 = tpu.matmul %26, %28, %cst_15 {dimension_numbers = #tpu.dot_dimension_numbers<[1], [0], [0], [1], [0, 0, 1, 1], [], []>} : vector<8x128xf32>, vector<128x128xf32>, vector<8x128xf32> -> vector<8x128xf32>
    %cst_16 = arith.constant dense<0.000000e+00> : vector<128xf32>
    %30 = vector.multi_reduction <add>, %29, %cst_16 [0] : vector<8x128xf32> to vector<128xf32>
    %31 = vector.shape_cast %30 : vector<128xf32> to vector<1x128xf32>
    %cst_17 = arith.constant 8.000000e+00 : f32
    %32 = vector.broadcast %cst_17 : f32 to vector<1x128xf32>
    %33 = arith.divf %31, %32 : vector<1x128xf32>
    %34 = vector.broadcast %33 : vector<1x128xf32> to vector<8x128xf32>
    %35 = arith.subf %29, %34 : vector<8x128xf32>
    %36 = arith.mulf %35, %35 : vector<8x128xf32>
    %cst_18 = arith.constant dense<0.000000e+00> : vector<128xf32>
    %37 = vector.multi_reduction <add>, %36, %cst_18 [0] : vector<8x128xf32> to vector<128xf32>
    %38 = vector.shape_cast %37 : vector<128xf32> to vector<1x128xf32>
    %cst_19 = arith.constant 8.000000e+00 : f32
    %39 = vector.broadcast %cst_19 : f32 to vector<1x128xf32>
    %40 = arith.divf %38, %39 : vector<1x128xf32>
    %c1_20 = arith.constant 1 : index
    %c0_21 = arith.constant 0 : index
    %41 = vector.load %arg2[%c1_20, %c0_21] : memref<9x128xf32, #tpu.memory_space<vmem>>, vector<1x128xf32>
    %cst_22 = arith.constant 9.99999974E-6 : f32
    %42 = vector.broadcast %cst_22 : f32 to vector<1x128xf32>
    %43 = arith.addf %40, %42 : vector<1x128xf32>
    %44 = math.rsqrt %43 : vector<1x128xf32>
    %45 = arith.mulf %41, %44 : vector<1x128xf32>
    %c5 = arith.constant 5 : index
    %c0_23 = arith.constant 0 : index
    %46 = vector.load %arg2[%c5, %c0_23] : memref<9x128xf32, #tpu.memory_space<vmem>>, vector<1x128xf32>
    %47 = vector.broadcast %45 : vector<1x128xf32> to vector<8x128xf32>
    %48 = arith.mulf %35, %47 : vector<8x128xf32>
    %49 = vector.broadcast %46 : vector<1x128xf32> to vector<8x128xf32>
    %50 = arith.addf %48, %49 : vector<8x128xf32>
    %cst_24 = arith.constant 0.000000e+00 : f32
    %51 = vector.broadcast %cst_24 : f32 to vector<8x128xf32>
    %52 = arith.maximumf %50, %51 : vector<8x128xf32>
    %c2 = arith.constant 2 : index
    %c0_25 = arith.constant 0 : index
    %c0_26 = arith.constant 0 : index
    %53 = vector.load %arg1[%c2, %c0_25, %c0_26] : memref<5x128x128xf32, #tpu.memory_space<vmem>>, vector<1x128x128xf32>
    %54 = vector.shape_cast %53 : vector<1x128x128xf32> to vector<128x128xf32>
    %cst_27 = arith.constant dense<0.000000e+00> : vector<8x128xf32>
    %55 = tpu.matmul %52, %54, %cst_27 {dimension_numbers = #tpu.dot_dimension_numbers<[1], [0], [0], [1], [0, 0, 1, 1], [], []>} : vector<8x128xf32>, vector<128x128xf32>, vector<8x128xf32> -> vector<8x128xf32>
    %cst_28 = arith.constant dense<0.000000e+00> : vector<128xf32>
    %56 = vector.multi_reduction <add>, %55, %cst_28 [0] : vector<8x128xf32> to vector<128xf32>
    %57 = vector.shape_cast %56 : vector<128xf32> to vector<1x128xf32>
    %cst_29 = arith.constant 8.000000e+00 : f32
    %58 = vector.broadcast %cst_29 : f32 to vector<1x128xf32>
    %59 = arith.divf %57, %58 : vector<1x128xf32>
    %60 = vector.broadcast %59 : vector<1x128xf32> to vector<8x128xf32>
    %61 = arith.subf %55, %60 : vector<8x128xf32>
    %62 = arith.mulf %61, %61 : vector<8x128xf32>
    %cst_30 = arith.constant dense<0.000000e+00> : vector<128xf32>
    %63 = vector.multi_reduction <add>, %62, %cst_30 [0] : vector<8x128xf32> to vector<128xf32>
    %64 = vector.shape_cast %63 : vector<128xf32> to vector<1x128xf32>
    %cst_31 = arith.constant 8.000000e+00 : f32
    %65 = vector.broadcast %cst_31 : f32 to vector<1x128xf32>
    %66 = arith.divf %64, %65 : vector<1x128xf32>
    %c2_32 = arith.constant 2 : index
    %c0_33 = arith.constant 0 : index
    %67 = vector.load %arg2[%c2_32, %c0_33] : memref<9x128xf32, #tpu.memory_space<vmem>>, vector<1x128xf32>
    %cst_34 = arith.constant 9.99999974E-6 : f32
    %68 = vector.broadcast %cst_34 : f32 to vector<1x128xf32>
    %69 = arith.addf %66, %68 : vector<1x128xf32>
    %70 = math.rsqrt %69 : vector<1x128xf32>
    %71 = arith.mulf %67, %70 : vector<1x128xf32>
    %c6 = arith.constant 6 : index
    %c0_35 = arith.constant 0 : index
    %72 = vector.load %arg2[%c6, %c0_35] : memref<9x128xf32, #tpu.memory_space<vmem>>, vector<1x128xf32>
    %73 = vector.broadcast %71 : vector<1x128xf32> to vector<8x128xf32>
    %74 = arith.mulf %61, %73 : vector<8x128xf32>
    %75 = vector.broadcast %72 : vector<1x128xf32> to vector<8x128xf32>
    %76 = arith.addf %74, %75 : vector<8x128xf32>
    %cst_36 = arith.constant 0.000000e+00 : f32
    %77 = vector.broadcast %cst_36 : f32 to vector<8x128xf32>
    %78 = arith.maximumf %76, %77 : vector<8x128xf32>
    %c3 = arith.constant 3 : index
    %c0_37 = arith.constant 0 : index
    %c0_38 = arith.constant 0 : index
    %79 = vector.load %arg1[%c3, %c0_37, %c0_38] : memref<5x128x128xf32, #tpu.memory_space<vmem>>, vector<1x128x128xf32>
    %80 = vector.shape_cast %79 : vector<1x128x128xf32> to vector<128x128xf32>
    %cst_39 = arith.constant dense<0.000000e+00> : vector<8x128xf32>
    %81 = tpu.matmul %78, %80, %cst_39 {dimension_numbers = #tpu.dot_dimension_numbers<[1], [0], [0], [1], [0, 0, 1, 1], [], []>} : vector<8x128xf32>, vector<128x128xf32>, vector<8x128xf32> -> vector<8x128xf32>
    %cst_40 = arith.constant dense<0.000000e+00> : vector<128xf32>
    %82 = vector.multi_reduction <add>, %81, %cst_40 [0] : vector<8x128xf32> to vector<128xf32>
    %83 = vector.shape_cast %82 : vector<128xf32> to vector<1x128xf32>
    %cst_41 = arith.constant 8.000000e+00 : f32
    %84 = vector.broadcast %cst_41 : f32 to vector<1x128xf32>
    %85 = arith.divf %83, %84 : vector<1x128xf32>
    %86 = vector.broadcast %85 : vector<1x128xf32> to vector<8x128xf32>
    %87 = arith.subf %81, %86 : vector<8x128xf32>
    %88 = arith.mulf %87, %87 : vector<8x128xf32>
    %cst_42 = arith.constant dense<0.000000e+00> : vector<128xf32>
    %89 = vector.multi_reduction <add>, %88, %cst_42 [0] : vector<8x128xf32> to vector<128xf32>
    %90 = vector.shape_cast %89 : vector<128xf32> to vector<1x128xf32>
    %cst_43 = arith.constant 8.000000e+00 : f32
    %91 = vector.broadcast %cst_43 : f32 to vector<1x128xf32>
    %92 = arith.divf %90, %91 : vector<1x128xf32>
    %c3_44 = arith.constant 3 : index
    %c0_45 = arith.constant 0 : index
    %93 = vector.load %arg2[%c3_44, %c0_45] : memref<9x128xf32, #tpu.memory_space<vmem>>, vector<1x128xf32>
    %cst_46 = arith.constant 9.99999974E-6 : f32
    %94 = vector.broadcast %cst_46 : f32 to vector<1x128xf32>
    %95 = arith.addf %92, %94 : vector<1x128xf32>
    %96 = math.rsqrt %95 : vector<1x128xf32>
    %97 = arith.mulf %93, %96 : vector<1x128xf32>
    %c7 = arith.constant 7 : index
    %c0_47 = arith.constant 0 : index
    %98 = vector.load %arg2[%c7, %c0_47] : memref<9x128xf32, #tpu.memory_space<vmem>>, vector<1x128xf32>
    %99 = vector.broadcast %97 : vector<1x128xf32> to vector<8x128xf32>
    %100 = arith.mulf %87, %99 : vector<8x128xf32>
    %101 = vector.broadcast %98 : vector<1x128xf32> to vector<8x128xf32>
    %102 = arith.addf %100, %101 : vector<8x128xf32>
    %cst_48 = arith.constant 0.000000e+00 : f32
    %103 = vector.broadcast %cst_48 : f32 to vector<8x128xf32>
    %104 = arith.maximumf %102, %103 : vector<8x128xf32>
    %c4_49 = arith.constant 4 : index
    %c0_50 = arith.constant 0 : index
    %c0_51 = arith.constant 0 : index
    %105 = vector.load %arg1[%c4_49, %c0_50, %c0_51] : memref<5x128x128xf32, #tpu.memory_space<vmem>>, vector<1x128x128xf32>
    %106 = vector.shape_cast %105 : vector<1x128x128xf32> to vector<128x128xf32>
    %cst_52 = arith.constant dense<0.000000e+00> : vector<8x128xf32>
    %107 = tpu.matmul %104, %106, %cst_52 {dimension_numbers = #tpu.dot_dimension_numbers<[1], [0], [0], [1], [0, 0, 1, 1], [], []>} : vector<8x128xf32>, vector<128x128xf32>, vector<8x128xf32> -> vector<8x128xf32>
    %c8 = arith.constant 8 : index
    %c0_53 = arith.constant 0 : index
    %108 = vector.load %arg2[%c8, %c0_53] : memref<9x128xf32, #tpu.memory_space<vmem>>, vector<1x128xf32>
    %109 = vector.broadcast %108 : vector<1x128xf32> to vector<8x128xf32>
    %110 = arith.addf %107, %109 : vector<8x128xf32>
    %cst_54 = arith.constant 0.000000e+00 : f32
    %111 = vector.broadcast %cst_54 : f32 to vector<8x128xf32>
    %112 = arith.maximumf %110, %111 : vector<8x128xf32>
    %113 = vector.extract_strided_slice %112 {offsets = [0, 0], sizes = [8, 16], strides = [1, 1]} : vector<8x128xf32> to vector<8x16xf32>
    %114 = vector.extract_strided_slice %112 {offsets = [0, 16], sizes = [8, 16], strides = [1, 1]} : vector<8x128xf32> to vector<8x16xf32>
    %c0_55 = arith.constant 0 : index
    %c32 = arith.constant 32 : index
    %115 = vector.load %arg0[%c0_55, %c32] : memref<8x128xf32, #tpu.memory_space<vmem>>, vector<8x16xf32>
    %cst_56 = arith.constant 5.000000e-01 : f32
    %116 = vector.broadcast %cst_56 : f32 to vector<8x16xf32>
    %117 = arith.mulf %114, %116 : vector<8x16xf32>
    %118 = math.exp %117 : vector<8x16xf32>
    %119 = arith.mulf %115, %118 : vector<8x16xf32>
    %120 = arith.addf %119, %113 : vector<8x16xf32>
    %c0_57 = arith.constant 0 : index
    %c0_58 = arith.constant 0 : index
    %121 = vector.load %arg3[%c0_57, %c0_58] : memref<8x128xf32, #tpu.memory_space<vmem>>, vector<8x128xf32>
    tpu.vector_store %arg3[%c0_57, %c0_58], %112 {strides = array<i32>} : memref<8x128xf32, #tpu.memory_space<vmem>>, vector<8x128xf32>,
    %c0_59 = arith.constant 0 : index
    %c32_60 = arith.constant 32 : index
    %122 = vector.load %arg3[%c0_59, %c32_60] : memref<8x128xf32, #tpu.memory_space<vmem>>, vector<8x16xf32>
    tpu.vector_store %arg3[%c0_59, %c32_60], %120 {strides = array<i32>} : memref<8x128xf32, #tpu.memory_space<vmem>>, vector<8x16xf32>,
    return
  }
}

</mosaic_0001>

<llo_original>
// kernel: encoder_forward.1
$region0: #{encoder_forward.1}
  #allocation0 [shape = 'u32[]', space=smem, size = 0x4, offset = 0x4, fixed_abs, tag = 'smem constant byte address 0x4 - core index']
  #allocation1 [shape = 'u32[144,128]{1,0:T(1,128)}', space=vmem, size = 0x12000, scoped, tag = 'internal scratch']
  %s0 = inlined_call_operand.vmem [shape: f32[8,128], index: 0, kind: input, shape index: {}]
  %s1 = inlined_call_operand.hbm [shape: f32[5,128,128], index: 1, kind: input, shape index: {}]
  %s2 = inlined_call_operand.vmem [shape: f32[9,128], index: 2, kind: input, shape index: {}]
  %s3 = inlined_call_operand.vmem [shape: f32[8,128], index: 3, kind: output, shape index: {}]
  %s4 = sld [smem:[#allocation0]]
  $region26: #{encoder_forward.1} parent=0
    _
  %s6 = ssub.s32 1, %s4
  %s7 = scalar_select 0, %s6, %s4
  $region1: #{encoder_forward.1} parent=0
    #allocation2 [shape = 'u8[327680]{0}', space=vmem, size = 0x50000, scoped, tag = 'input window, operand 1, single buffered']
    #allocation3 [shape = 's32[1]{0}', space=sflag, size = 0x4, scoped, tag = 'scoped memory for encoder_forward.1']
    %8 = vsyncpa [#allocation3], 0
    // Predicated region
    $region2: #{encoder_forward.1} parent=1 // pred_check
      _
    $region3: #{encoder_forward.1} parent=1 // pred_check_branch
      %10 = sbr.rel (0) target = $region5
    $region4: #{encoder_forward.1} parent=1 // pred_region
      _
    $region5: #{encoder_forward.1} parent=1 // pred_fallthru
      _
    // Predicated region
    $region6: #{encoder_forward.1} parent=1 // pred_check
      _
    $region7: #{encoder_forward.1} parent=1 // pred_check_branch
      %12 = sbr.rel (0) target = $region9
    $region8: #{encoder_forward.1} parent=1 // pred_region
      %s14 = ssub.s32 10240, 10240
      %15 = vsyncadd [#allocation3], %s14
      %s16 = sshll.u32 [#allocation2], 4
      %s17 = int_to_ptr.vmem [resolvable:$true] %s16
      %22 = dma.hbm_to_vmem [thread:$0]  %s1, 10240, %s17, [#allocation3], 128, 128, 8
    $region9: #{encoder_forward.1} parent=1 // pred_fallthru
      _
    // Predicated region
    $region10: #{encoder_forward.1} parent=1 // pred_check
      _
    $region11: #{encoder_forward.1} parent=1 // pred_check_branch
      %24 = sbr.rel (0) target = $region13
    $region12: #{encoder_forward.1} parent=1 // pred_region
      _
    $region13: #{encoder_forward.1} parent=1 // pred_fallthru
      _
    // Predicated region
    $region14: #{encoder_forward.1} parent=1 // pred_check
      _
    $region15: #{encoder_forward.1} parent=1 // pred_check_branch
      %26 = sbr.rel (0) target = $region17
    $region16: #{encoder_forward.1} parent=1 // pred_region
      %27 = dma.done [#allocation3], 10240
    $region17: #{encoder_forward.1} parent=1 // pred_fallthru
      _
    %v28 = vld [vmem:[%s0] sm:$0xff]
    %v29 = vld [vmem:[#allocation2] sm:$0xff]
    %v30 = vld [vmem:[#allocation2 + $0x8] sm:$0xff]
    %v31 = vld [vmem:[#allocation2 + $0x10] sm:$0xff]
    %v32 = vld [vmem:[#allocation2 + $0x18] sm:$0xff]
    %v33 = vld [vmem:[#allocation2 + $0x20] sm:$0xff]
    %v34 = vld [vmem:[#allocation2 + $0x28] sm:$0xff]
    %v35 = vld [vmem:[#allocation2 + $0x30] sm:$0xff]
    %v36 = vld [vmem:[#allocation2 + $0x38] sm:$0xff]
    %v37 = vld [vmem:[#allocation2 + $0x40] sm:$0xff]
    %v38 = vld [vmem:[#allocation2 + $0x48] sm:$0xff]
    %v39 = vld [vmem:[#allocation2 + $0x50] sm:$0xff]
    %v40 = vld [vmem:[#allocation2 + $0x58] sm:$0xff]
    %v41 = vld [vmem:[#allocation2 + $0x60] sm:$0xff]
    %v42 = vld [vmem:[#allocation2 + $0x68] sm:$0xff]
    %v43 = vld [vmem:[#allocation2 + $0x70] sm:$0xff]
    %v44 = vld [vmem:[#allocation2 + $0x78] sm:$0xff]
    %45 = vmatprep.subr.mxu0 0.0
    %46 = vmatpush1.msra.mxu0 %v29
    %47 = vmatprep.subr.mxu0 0.0
    %48 = vmatpush1.msra.mxu0 %v30
    %49 = vmatprep.subr.mxu0 0.0
    %50 = vmatpush1.msra.mxu0 %v31
    %51 = vmatprep.subr.mxu0 0.0
    %52 = vmatpush1.msra.mxu0 %v32
    %53 = vmatprep.subr.mxu0 0.0
    %54 = vmatpush1.msra.mxu0 %v33
    %55 = vmatprep.subr.mxu0 0.0
    %56 = vmatpush1.msra.mxu0 %v34
    %57 = vmatprep.subr.mxu0 0.0
    %58 = vmatpush1.msra.mxu0 %v35
    %59 = vmatprep.subr.mxu0 0.0
    %60 = vmatpush1.msra.mxu0 %v36
    %61 = vmatprep.subr.mxu0 0.0
    %62 = vmatpush1.msra.mxu0 %v37
    %63 = vmatprep.subr.mxu0 0.0
    %64 = vmatpush1.msra.mxu0 %v38
    %65 = vmatprep.subr.mxu0 0.0
    %66 = vmatpush1.msra.mxu0 %v39
    %67 = vmatprep.subr.mxu0 0.0
    %68 = vmatpush1.msra.mxu0 %v40
    %69 = vmatprep.subr.mxu0 0.0
    %70 = vmatpush1.msra.mxu0 %v41
    %71 = vmatprep.subr.mxu0 0.0
    %72 = vmatpush1.msra.mxu0 %v42
    %73 = vmatprep.subr.mxu0 0.0
    %74 = vmatpush1.msra.mxu0 %v43
    %75 = vmatprep.subr.mxu0 0.0
    %76 = vmatpush1.msra.mxu0 %v44
    %77 = vmatprep.subr.mxu0 0.0
    %78 = vmatpush1.msra.mxu0 0.0
    %79 = vmatprep.subr.mxu0 0.0
    %80 = vmatpush1.msra.mxu0 0.0
    %81 = vmatprep.subr.mxu0 0.0
    %82 = vmatpush1.msra.mxu0 0.0
    %83 = vmatprep.subr.mxu0 0.0
    %84 = vmatpush1.msra.mxu0 0.0
    %85 = vmatprep.subr.mxu0 0.0
    %86 = vmatpush1.msra.mxu0 0.0
    %87 = vmatprep.subr.mxu0 0.0
    %88 = vmatpush1.msra.mxu0 0.0
    %89 = vmatprep.subr.mxu0 0.0
    %90 = vmatpush1.msra.mxu0 0.0
    %91 = vmatprep.subr.mxu0 0.0
    %92 = vmatpush1.msra.mxu0 0.0
    %93 = vmatprep.subr.mxu0 0.0
    %94 = vmatpush1.msra.mxu0 0.0
    %95 = vmatprep.subr.mxu0 0.0
    %96 = vmatpush1.msra.mxu0 0.0
    %97 = vmatprep.subr.mxu0 0.0
    %98 = vmatpush1.msra.mxu0 0.0
    %99 = vmatprep.subr.mxu0 0.0
    %100 = vmatpush1.msra.mxu0 0.0
    %101 = vmatprep.subr.mxu0 0.0
    %102 = vmatpush1.msra.mxu0 0.0
    %103 = vmatprep.subr.mxu0 0.0
    %104 = vmatpush1.msra.mxu0 0.0
    %105 = vmatprep.subr.mxu0 0.0
    %106 = vmatpush1.msra.mxu0 0.0
    %107 = vmatprep.subr.mxu0 0.0
    %108 = vmatpush1.msra.mxu0 0.0
    %109 = vmatprep.mubr.f32.mxu0 0.0
    %110 = vmatmul.mubr.f32.gmra.mrb[0].mxu0 %v28
    %v111 = vpop.f32.mrb[0].mxu0
    %v112 = vadd.f32 0.0, %v111
    %v113 = vpop.f32.mrb[0].mxu0
    %114 = vdwg.mxu0
    %v115 = vrot.slane %v112, 4
    %v116 = vadd.f32 %v112, %v115
    %v117 = vrot.slane %v116, 2
    %v118 = vadd.f32 %v116, %v117
    %v119 = vrot.slane %v118, 1
    %v120 = vadd.f32 %v118, %v119
    %v121 = vrcp.pop 8.0
    %v122 = vmul.f32 %v120, %v121
    %v123 = vsub.f32 %v112, %v122
    %v124 = vmul.f32 %v123, %v123
    %v125 = vrot.slane %v124, 4
    %v126 = vadd.f32 %v124, %v125
    %v127 = vrot.slane %v126, 2
    %v128 = vadd.f32 %v126, %v127
    %v129 = vrot.slane %v128, 1
    %v130 = vadd.f32 %v128, %v129
    %v131 = vmul.f32 %v130, %v121
    %v132 = vld [vmem:[%s2] sm:$0x1]
    %v133 = vadd.f32 %v131, 1e-05
    %v134 = vrsqrt.pop %v133
    %v135 = vmul.f32 %v132, %v134
    %v136 = vld [vmem:[%s2 + $0x4] sm:$0x1]
    %v137 = vlaneseq
    %v138 = vshrl.u32 %v137, 7
    %v139 = vsub.s32 0, %v138
    %v140 = vrot.slane %v135, %v139
    %v141 = vmul.f32 %v123, %v140
    %v142 = vlaneseq
    %v143 = vshrl.u32 %v142, 7
    %v144 = vsub.s32 0, %v143
    %v145 = vrot.slane %v136, %v144
    %v146 = vadd.f32 %v141, %v145
    %v147 = vmax.f32 %v146, 0.0
    %s148 = scalar_lea.vmem [#allocation2], 128
    %v149 = vld [vmem:[%s148] sm:$0xff]
    %v150 = vld [vmem:[%s148 + $0x8] sm:$0xff]
    %v151 = vld [vmem:[%s148 + $0x10] sm:$0xff]
    %v152 = vld [vmem:[%s148 + $0x18] sm:$0xff]
    %v153 = vld [vmem:[%s148 + $0x20] sm:$0xff]
    %v154 = vld [vmem:[%s148 + $0x28] sm:$0xff]
    %v155 = vld [vmem:[%s148 + $0x30] sm:$0xff]
    %v156 = vld [vmem:[%s148 + $0x38] sm:$0xff]
    %v157 = vld [vmem:[%s148 + $0x40] sm:$0xff]
    %v158 = vld [vmem:[%s148 + $0x48] sm:$0xff]
    %v159 = vld [vmem:[%s148 + $0x50] sm:$0xff]
    %v160 = vld [vmem:[%s148 + $0x58] sm:$0xff]
    %v161 = vld [vmem:[%s148 + $0x60] sm:$0xff]
    %v162 = vld [vmem:[%s148 + $0x68] sm:$0xff]
    %v163 = vld [vmem:[%s148 + $0x70] sm:$0xff]
    %v164 = vld [vmem:[%s148 + $0x78] sm:$0xff]
    %165 = vmatprep.subr.mxu0 0.0
    %166 = vmatpush1.msra.mxu0 %v149
    %167 = vmatprep.subr.mxu0 0.0
    %168 = vmatpush1.msra.mxu0 %v150
    %169 = vmatprep.subr.mxu0 0.0
    %170 = vmatpush1.msra.mxu0 %v151
    %171 = vmatprep.subr.mxu0 0.0
    %172 = vmatpush1.msra.mxu0 %v152
    %173 = vmatprep.subr.mxu0 0.0
    %174 = vmatpush1.msra.mxu0 %v153
    %175 = vmatprep.subr.mxu0 0.0
    %176 = vmatpush1.msra.mxu0 %v154
    %177 = vmatprep.subr.mxu0 0.0
    %178 = vmatpush1.msra.mxu0 %v155
    %179 = vmatprep.subr.mxu0 0.0
    %180 = vmatpush1.msra.mxu0 %v156
    %181 = vmatprep.subr.mxu0 0.0
    %182 = vmatpush1.msra.mxu0 %v157
    %183 = vmatprep.subr.mxu0 0.0
    %184 = vmatpush1.msra.mxu0 %v158
    %185 = vmatprep.subr.mxu0 0.0
    %186 = vmatpush1.msra.mxu0 %v159
    %187 = vmatprep.subr.mxu0 0.0
    %188 = vmatpush1.msra.mxu0 %v160
    %189 = vmatprep.subr.mxu0 0.0
    %190 = vmatpush1.msra.mxu0 %v161
    %191 = vmatprep.subr.mxu0 0.0
    %192 = vmatpush1.msra.mxu0 %v162
    %193 = vmatprep.subr.mxu0 0.0
    %194 = vmatpush1.msra.mxu0 %v163
    %195 = vmatprep.subr.mxu0 0.0
    %196 = vmatpush1.msra.mxu0 %v164
    %197 = vmatprep.subr.mxu0 0.0
    %198 = vmatpush1.msra.mxu0 0.0
    %199 = vmatprep.subr.mxu0 0.0
    %200 = vmatpush1.msra.mxu0 0.0
    %201 = vmatprep.subr.mxu0 0.0
    %202 = vmatpush1.msra.mxu0 0.0
    %203 = vmatprep.subr.mxu0 0.0
    %204 = vmatpush1.msra.mxu0 0.0
    %205 = vmatprep.subr.mxu0 0.0
    %206 = vmatpush1.msra.mxu0 0.0
    %207 = vmatprep.subr.mxu0 0.0
    %208 = vmatpush1.msra.mxu0 0.0
    %209 = vmatprep.subr.mxu0 0.0
    %210 = vmatpush1.msra.mxu0 0.0
    %211 = vmatprep.subr.mxu0 0.0
    %212 = vmatpush1.msra.mxu0 0.0
    %213 = vmatprep.subr.mxu0 0.0
    %214 = vmatpush1.msra.mxu0 0.0
    %215 = vmatprep.subr.mxu0 0.0
    %216 = vmatpush1.msra.mxu0 0.0
    %217 = vmatprep.subr.mxu0 0.0
    %218 = vmatpush1.msra.mxu0 0.0
    %219 = vmatprep.subr.mxu0 0.0
    %220 = vmatpush1.msra.mxu0 0.0
    %221 = vmatprep.subr.mxu0 0.0
    %222 = vmatpush1.msra.mxu0 0.0
    %223 = vmatprep.subr.mxu0 0.0
    %224 = vmatpush1.msra.mxu0 0.0
    %225 = vmatprep.subr.mxu0 0.0
    %226 = vmatpush1.msra.mxu0 0.0
    %227 = vmatprep.subr.mxu0 0.0
    %228 = vmatpush1.msra.mxu0 0.0
    %229 = vmatprep.mubr.f32.mxu0 0.0
    %230 = vmatmul.mubr.f32.gmra.mrb[0].mxu0 %v147
    %v231 = vpop.f32.mrb[0].mxu0
    %v232 = vadd.f32 0.0, %v231
    %v233 = vpop.f32.mrb[0].mxu0
    %234 = vdwg.mxu0
    %v235 = vrot.slane %v232, 4
    %v236 = vadd.f32 %v232, %v235
    %v237 = vrot.slane %v236, 2
    %v238 = vadd.f32 %v236, %v237
    %v239 = vrot.slane %v238, 1
    %v240 = vadd.f32 %v238, %v239
    %v241 = vmul.f32 %v240, %v121
    %v242 = vsub.f32 %v232, %v241
    %v243 = vmul.f32 %v242, %v242
    %v244 = vrot.slane %v243, 4
    %v245 = vadd.f32 %v243, %v244
    %v246 = vrot.slane %v245, 2
    %v247 = vadd.f32 %v245, %v246
    %v248 = vrot.slane %v247, 1
    %v249 = vadd.f32 %v247, %v248
    %v250 = vmul.f32 %v249, %v121
    %v251 = vld [vmem:[%s2 + $0x1] sm:$0x1]
    %v252 = vadd.f32 %v250, 1e-05
    %v253 = vrsqrt.pop %v252
    %v254 = vmul.f32 %v251, %v253
    %v255 = vld [vmem:[%s2 + $0x5] sm:$0x1]
    %v256 = vlaneseq
    %v257 = vshrl.u32 %v256, 7
    %v258 = vsub.s32 0, %v257
    %v259 = vrot.slane %v254, %v258
    %v260 = vmul.f32 %v242, %v259
    %v261 = vlaneseq
    %v262 = vshrl.u32 %v261, 7
    %v263 = vsub.s32 0, %v262
    %v264 = vrot.slane %v255, %v263
    %v265 = vadd.f32 %v260, %v264
    %v266 = vmax.f32 %v265, 0.0
    %s267 = scalar_lea.vmem [#allocation2], 256
    %v268 = vld [vmem:[%s267] sm:$0xff]
    %v269 = vld [vmem:[%s267 + $0x8] sm:$0xff]
    %v270 = vld [vmem:[%s267 + $0x10] sm:$0xff]
    %v271 = vld [vmem:[%s267 + $0x18] sm:$0xff]
    %v272 = vld [vmem:[%s267 + $0x20] sm:$0xff]
    %v273 = vld [vmem:[%s267 + $0x28] sm:$0xff]
    %v274 = vld [vmem:[%s267 + $0x30] sm:$0xff]
    %v275 = vld [vmem:[%s267 + $0x38] sm:$0xff]
    %v276 = vld [vmem:[%s267 + $0x40] sm:$0xff]
    %v277 = vld [vmem:[%s267 + $0x48] sm:$0xff]
    %v278 = vld [vmem:[%s267 + $0x50] sm:$0xff]
    %v279 = vld [vmem:[%s267 + $0x58] sm:$0xff]
    %v280 = vld [vmem:[%s267 + $0x60] sm:$0xff]
    %v281 = vld [vmem:[%s267 + $0x68] sm:$0xff]
    %v282 = vld [vmem:[%s267 + $0x70] sm:$0xff]
    %v283 = vld [vmem:[%s267 + $0x78] sm:$0xff]
    %284 = vmatprep.subr.mxu0 0.0
    %285 = vmatpush1.msra.mxu0 %v268
    %286 = vmatprep.subr.mxu0 0.0
    %287 = vmatpush1.msra.mxu0 %v269
    %288 = vmatprep.subr.mxu0 0.0
    %289 = vmatpush1.msra.mxu0 %v270
    %290 = vmatprep.subr.mxu0 0.0
    %291 = vmatpush1.msra.mxu0 %v271
    %292 = vmatprep.subr.mxu0 0.0
    %293 = vmatpush1.msra.mxu0 %v272
    %294 = vmatprep.subr.mxu0 0.0
    %295 = vmatpush1.msra.mxu0 %v273
    %296 = vmatprep.subr.mxu0 0.0
    %297 = vmatpush1.msra.mxu0 %v274
    %298 = vmatprep.subr.mxu0 0.0
    %299 = vmatpush1.msra.mxu0 %v275
    %300 = vmatprep.subr.mxu0 0.0
    %301 = vmatpush1.msra.mxu0 %v276
    %302 = vmatprep.subr.mxu0 0.0
    %303 = vmatpush1.msra.mxu0 %v277
    %304 = vmatprep.subr.mxu0 0.0
    %305 = vmatpush1.msra.mxu0 %v278
    %306 = vmatprep.subr.mxu0 0.0
    %307 = vmatpush1.msra.mxu0 %v279
    %308 = vmatprep.subr.mxu0 0.0
    %309 = vmatpush1.msra.mxu0 %v280
    %310 = vmatprep.subr.mxu0 0.0
    %311 = vmatpush1.msra.mxu0 %v281
    %312 = vmatprep.subr.mxu0 0.0
    %313 = vmatpush1.msra.mxu0 %v282
    %314 = vmatprep.subr.mxu0 0.0
    %315 = vmatpush1.msra.mxu0 %v283
    %316 = vmatprep.subr.mxu0 0.0
    %317 = vmatpush1.msra.mxu0 0.0
    %318 = vmatprep.subr.mxu0 0.0
    %319 = vmatpush1.msra.mxu0 0.0
    %320 = vmatprep.subr.mxu0 0.0
    %321 = vmatpush1.msra.mxu0 0.0
    %322 = vmatprep.subr.mxu0 0.0
    %323 = vmatpush1.msra.mxu0 0.0
    %324 = vmatprep.subr.mxu0 0.0
    %325 = vmatpush1.msra.mxu0 0.0
    %326 = vmatprep.subr.mxu0 0.0
    %327 = vmatpush1.msra.mxu0 0.0
    %328 = vmatprep.subr.mxu0 0.0
    %329 = vmatpush1.msra.mxu0 0.0
    %330 = vmatprep.subr.mxu0 0.0
    %331 = vmatpush1.msra.mxu0 0.0
    %332 = vmatprep.subr.mxu0 0.0
    %333 = vmatpush1.msra.mxu0 0.0
    %334 = vmatprep.subr.mxu0 0.0
    %335 = vmatpush1.msra.mxu0 0.0
    %336 = vmatprep.subr.mxu0 0.0
    %337 = vmatpush1.msra.mxu0 0.0
    %338 = vmatprep.subr.mxu0 0.0
    %339 = vmatpush1.msra.mxu0 0.0
    %340 = vmatprep.subr.mxu0 0.0
    %341 = vmatpush1.msra.mxu0 0.0
    %342 = vmatprep.subr.mxu0 0.0
    %343 = vmatpush1.msra.mxu0 0.0
    %344 = vmatprep.subr.mxu0 0.0
    %345 = vmatpush1.msra.mxu0 0.0
    %346 = vmatprep.subr.mxu0 0.0
    %347 = vmatpush1.msra.mxu0 0.0
    %348 = vmatprep.mubr.f32.mxu0 0.0
    %349 = vmatmul.mubr.f32.gmra.mrb[0].mxu0 %v266
    %v350 = vpop.f32.mrb[0].mxu0
    %v351 = vadd.f32 0.0, %v350
    %v352 = vpop.f32.mrb[0].mxu0
    %353 = vdwg.mxu0
    %v354 = vrot.slane %v351, 4
    %v355 = vadd.f32 %v351, %v354
    %v356 = vrot.slane %v355, 2
    %v357 = vadd.f32 %v355, %v356
    %v358 = vrot.slane %v357, 1
    %v359 = vadd.f32 %v357, %v358
    %v360 = vmul.f32 %v359, %v121
    %v361 = vsub.f32 %v351, %v360
    %v362 = vmul.f32 %v361, %v361
    %v363 = vrot.slane %v362, 4
    %v364 = vadd.f32 %v362, %v363
    %v365 = vrot.slane %v364, 2
    %v366 = vadd.f32 %v364, %v365
    %v367 = vrot.slane %v366, 1
    %v368 = vadd.f32 %v366, %v367
    %v369 = vmul.f32 %v368, %v121
    %v370 = vld [vmem:[%s2 + $0x2] sm:$0x1]
    %v371 = vadd.f32 %v369, 1e-05
    %v372 = vrsqrt.pop %v371
    %v373 = vmul.f32 %v370, %v372
    %v374 = vld [vmem:[%s2 + $0x6] sm:$0x1]
    %v375 = vlaneseq
    %v376 = vshrl.u32 %v375, 7
    %v377 = vsub.s32 0, %v376
    %v378 = vrot.slane %v373, %v377
    %v379 = vmul.f32 %v361, %v378
    %v380 = vlaneseq
    %v381 = vshrl.u32 %v380, 7
    %v382 = vsub.s32 0, %v381
    %v383 = vrot.slane %v374, %v382
    %v384 = vadd.f32 %v379, %v383
    %v385 = vmax.f32 %v384, 0.0
    %s386 = scalar_lea.vmem [#allocation2], 384
    %v387 = vld [vmem:[%s386] sm:$0xff]
    %v388 = vld [vmem:[%s386 + $0x8] sm:$0xff]
    %v389 = vld [vmem:[%s386 + $0x10] sm:$0xff]
    %v390 = vld [vmem:[%s386 + $0x18] sm:$0xff]
    %v391 = vld [vmem:[%s386 + $0x20] sm:$0xff]
    %v392 = vld [vmem:[%s386 + $0x28] sm:$0xff]
    %v393 = vld [vmem:[%s386 + $0x30] sm:$0xff]
    %v394 = vld [vmem:[%s386 + $0x38] sm:$0xff]
    %v395 = vld [vmem:[%s386 + $0x40] sm:$0xff]
    %v396 = vld [vmem:[%s386 + $0x48] sm:$0xff]
    %v397 = vld [vmem:[%s386 + $0x50] sm:$0xff]
    %v398 = vld [vmem:[%s386 + $0x58] sm:$0xff]
    %v399 = vld [vmem:[%s386 + $0x60] sm:$0xff]
    %v400 = vld [vmem:[%s386 + $0x68] sm:$0xff]
    %v401 = vld [vmem:[%s386 + $0x70] sm:$0xff]
    %v402 = vld [vmem:[%s386 + $0x78] sm:$0xff]
    %403 = vmatprep.subr.mxu0 0.0
    %404 = vmatpush1.msra.mxu0 %v387
    %405 = vmatprep.subr.mxu0 0.0
    %406 = vmatpush1.msra.mxu0 %v388
    %407 = vmatprep.subr.mxu0 0.0
    %408 = vmatpush1.msra.mxu0 %v389
    %409 = vmatprep.subr.mxu0 0.0
    %410 = vmatpush1.msra.mxu0 %v390
    %411 = vmatprep.subr.mxu0 0.0
    %412 = vmatpush1.msra.mxu0 %v391
    %413 = vmatprep.subr.mxu0 0.0
    %414 = vmatpush1.msra.mxu0 %v392
    %415 = vmatprep.subr.mxu0 0.0
    %416 = vmatpush1.msra.mxu0 %v393
    %417 = vmatprep.subr.mxu0 0.0
    %418 = vmatpush1.msra.mxu0 %v394
    %419 = vmatprep.subr.mxu0 0.0
    %420 = vmatpush1.msra.mxu0 %v395
    %421 = vmatprep.subr.mxu0 0.0
    %422 = vmatpush1.msra.mxu0 %v396
    %423 = vmatprep.subr.mxu0 0.0
    %424 = vmatpush1.msra.mxu0 %v397
    %425 = vmatprep.subr.mxu0 0.0
    %426 = vmatpush1.msra.mxu0 %v398
    %427 = vmatprep.subr.mxu0 0.0
    %428 = vmatpush1.msra.mxu0 %v399
    %429 = vmatprep.subr.mxu0 0.0
    %430 = vmatpush1.msra.mxu0 %v400
    %431 = vmatprep.subr.mxu0 0.0
    %432 = vmatpush1.msra.mxu0 %v401
    %433 = vmatprep.subr.mxu0 0.0
    %434 = vmatpush1.msra.mxu0 %v402
    %435 = vmatprep.subr.mxu0 0.0
    %436 = vmatpush1.msra.mxu0 0.0
    %437 = vmatprep.subr.mxu0 0.0
    %438 = vmatpush1.msra.mxu0 0.0
    %439 = vmatprep.subr.mxu0 0.0
    %440 = vmatpush1.msra.mxu0 0.0
    %441 = vmatprep.subr.mxu0 0.0
    %442 = vmatpush1.msra.mxu0 0.0
    %443 = vmatprep.subr.mxu0 0.0
    %444 = vmatpush1.msra.mxu0 0.0
    %445 = vmatprep.subr.mxu0 0.0
    %446 = vmatpush1.msra.mxu0 0.0
    %447 = vmatprep.subr.mxu0 0.0
    %448 = vmatpush1.msra.mxu0 0.0
    %449 = vmatprep.subr.mxu0 0.0
    %450 = vmatpush1.msra.mxu0 0.0
    %451 = vmatprep.subr.mxu0 0.0
    %452 = vmatpush1.msra.mxu0 0.0
    %453 = vmatprep.subr.mxu0 0.0
    %454 = vmatpush1.msra.mxu0 0.0
    %455 = vmatprep.subr.mxu0 0.0
    %456 = vmatpush1.msra.mxu0 0.0
    %457 = vmatprep.subr.mxu0 0.0
    %458 = vmatpush1.msra.mxu0 0.0
    %459 = vmatprep.subr.mxu0 0.0
    %460 = vmatpush1.msra.mxu0 0.0
    %461 = vmatprep.subr.mxu0 0.0
    %462 = vmatpush1.msra.mxu0 0.0
    %463 = vmatprep.subr.mxu0 0.0
    %464 = vmatpush1.msra.mxu0 0.0
    %465 = vmatprep.subr.mxu0 0.0
    %466 = vmatpush1.msra.mxu0 0.0
    %467 = vmatprep.mubr.f32.mxu0 0.0
    %468 = vmatmul.mubr.f32.gmra.mrb[0].mxu0 %v385
    %v469 = vpop.f32.mrb[0].mxu0
    %v470 = vadd.f32 0.0, %v469
    %v471 = vpop.f32.mrb[0].mxu0
    %472 = vdwg.mxu0
    %v473 = vrot.slane %v470, 4
    %v474 = vadd.f32 %v470, %v473
    %v475 = vrot.slane %v474, 2
    %v476 = vadd.f32 %v474, %v475
    %v477 = vrot.slane %v476, 1
    %v478 = vadd.f32 %v476, %v477
    %v479 = vmul.f32 %v478, %v121
    %v480 = vsub.f32 %v470, %v479
    %v481 = vmul.f32 %v480, %v480
    %v482 = vrot.slane %v481, 4
    %v483 = vadd.f32 %v481, %v482
    %v484 = vrot.slane %v483, 2
    %v485 = vadd.f32 %v483, %v484
    %v486 = vrot.slane %v485, 1
    %v487 = vadd.f32 %v485, %v486
    %v488 = vmul.f32 %v487, %v121
    %v489 = vld [vmem:[%s2 + $0x3] sm:$0x1]
    %v490 = vadd.f32 %v488, 1e-05
    %v491 = vrsqrt.pop %v490
    %v492 = vmul.f32 %v489, %v491
    %v493 = vld [vmem:[%s2 + $0x7] sm:$0x1]
    %v494 = vlaneseq
    %v495 = vshrl.u32 %v494, 7
    %v496 = vsub.s32 0, %v495
    %v497 = vrot.slane %v492, %v496
    %v498 = vmul.f32 %v480, %v497
    %v499 = vlaneseq
    %v500 = vshrl.u32 %v499, 7
    %v501 = vsub.s32 0, %v500
    %v502 = vrot.slane %v493, %v501
    %v503 = vadd.f32 %v498, %v502
    %v504 = vmax.f32 %v503, 0.0
    %s505 = scalar_lea.vmem [#allocation2], 512
    %v506 = vld [vmem:[%s505] sm:$0xff]
    %v507 = vld [vmem:[%s505 + $0x8] sm:$0xff]
    %v508 = vld [vmem:[%s505 + $0x10] sm:$0xff]
    %v509 = vld [vmem:[%s505 + $0x18] sm:$0xff]
    %v510 = vld [vmem:[%s505 + $0x20] sm:$0xff]
    %v511 = vld [vmem:[%s505 + $0x28] sm:$0xff]
    %v512 = vld [vmem:[%s505 + $0x30] sm:$0xff]
    %v513 = vld [vmem:[%s505 + $0x38] sm:$0xff]
    %v514 = vld [vmem:[%s505 + $0x40] sm:$0xff]
    %v515 = vld [vmem:[%s505 + $0x48] sm:$0xff]
    %v516 = vld [vmem:[%s505 + $0x50] sm:$0xff]
    %v517 = vld [vmem:[%s505 + $0x58] sm:$0xff]
    %v518 = vld [vmem:[%s505 + $0x60] sm:$0xff]
    %v519 = vld [vmem:[%s505 + $0x68] sm:$0xff]
    %v520 = vld [vmem:[%s505 + $0x70] sm:$0xff]
    %v521 = vld [vmem:[%s505 + $0x78] sm:$0xff]
    %v522 = vld [vmem:[%s2 + $0x8] sm:$0x1]
    %v523 = vlaneseq
    %v524 = vshrl.u32 %v523, 7
    %v525 = vsub.s32 0, %v524
    %v526 = vrot.slane %v522, %v525
    %527 = vmatprep.subr.mxu0 0.0
    %528 = vmatpush1.msra.mxu0 %v506
    %529 = vmatprep.subr.mxu0 0.0
    %530 = vmatpush1.msra.mxu0 %v507
    %531 = vmatprep.subr.mxu0 0.0
    %532 = vmatpush1.msra.mxu0 %v508
    %533 = vmatprep.subr.mxu0 0.0
    %534 = vmatpush1.msra.mxu0 %v509
    %535 = vmatprep.subr.mxu0 0.0
    %536 = vmatpush1.msra.mxu0 %v510
    %537 = vmatprep.subr.mxu0 0.0
    %538 = vmatpush1.msra.mxu0 %v511
    %539 = vmatprep.subr.mxu0 0.0
    %540 = vmatpush1.msra.mxu0 %v512
    %541 = vmatprep.subr.mxu0 0.0
    %542 = vmatpush1.msra.mxu0 %v513
    %543 = vmatprep.subr.mxu0 0.0
    %544 = vmatpush1.msra.mxu0 %v514
    %545 = vmatprep.subr.mxu0 0.0
    %546 = vmatpush1.msra.mxu0 %v515
    %547 = vmatprep.subr.mxu0 0.0
    %548 = vmatpush1.msra.mxu0 %v516
    %549 = vmatprep.subr.mxu0 0.0
    %550 = vmatpush1.msra.mxu0 %v517
    %551 = vmatprep.subr.mxu0 0.0
    %552 = vmatpush1.msra.mxu0 %v518
    %553 = vmatprep.subr.mxu0 0.0
    %554 = vmatpush1.msra.mxu0 %v519
    %555 = vmatprep.subr.mxu0 0.0
    %556 = vmatpush1.msra.mxu0 %v520
    %557 = vmatprep.subr.mxu0 0.0
    %558 = vmatpush1.msra.mxu0 %v521
    %559 = vmatprep.subr.mxu0 0.0
    %560 = vmatpush1.msra.mxu0 0.0
    %561 = vmatprep.subr.mxu0 0.0
    %562 = vmatpush1.msra.mxu0 0.0
    %563 = vmatprep.subr.mxu0 0.0
    %564 = vmatpush1.msra.mxu0 0.0
    %565 = vmatprep.subr.mxu0 0.0
    %566 = vmatpush1.msra.mxu0 0.0
    %567 = vmatprep.subr.mxu0 0.0
    %568 = vmatpush1.msra.mxu0 0.0
    %569 = vmatprep.subr.mxu0 0.0
    %570 = vmatpush1.msra.mxu0 0.0
    %571 = vmatprep.subr.mxu0 0.0
    %572 = vmatpush1.msra.mxu0 0.0
    %573 = vmatprep.subr.mxu0 0.0
    %574 = vmatpush1.msra.mxu0 0.0
    %575 = vmatprep.subr.mxu0 0.0
    %576 = vmatpush1.msra.mxu0 0.0
    %577 = vmatprep.subr.mxu0 0.0
    %578 = vmatpush1.msra.mxu0 0.0
    %579 = vmatprep.subr.mxu0 0.0
    %580 = vmatpush1.msra.mxu0 0.0
    %581 = vmatprep.subr.mxu0 0.0
    %582 = vmatpush1.msra.mxu0 0.0
    %583 = vmatprep.subr.mxu0 0.0
    %584 = vmatpush1.msra.mxu0 0.0
    %585 = vmatprep.subr.mxu0 0.0
    %586 = vmatpush1.msra.mxu0 0.0
    %587 = vmatprep.subr.mxu0 0.0
    %588 = vmatpush1.msra.mxu0 0.0
    %589 = vmatprep.subr.mxu0 0.0
    %590 = vmatpush1.msra.mxu0 0.0
    %591 = vmatprep.mubr.f32.mxu0 0.0
    %592 = vmatmul.mubr.f32.gmra.mrb[0].mxu0 %v504
    %v593 = vpop.f32.mrb[0].mxu0
    %v594 = vadd.f32 %v526, %v593
    %v595 = vpop.f32.mrb[0].mxu0
    %596 = vdwg.mxu0
    %v597 = vmax.f32 %v594, 0.0
    %v598 = vmul.f32 %v597, 0.5
    %v599 = vmul.f32 %v598, 1.442695
    %v600 = vpow.pop %v599
    %602 = vrot.lane.b32.xlu0 %v600, 16
    %v603 = vpop.permute.xlu0 %602
    %v605 = vmul.f32 %v28, %v603
    %607 = vrot.lane.b32.xlu0 %v597, 32
    %v608 = vpop.permute.xlu0 %607
    %v610 = vadd.f32 %v605, %v608
    %611 = vst [vmem:[%s3] sm:$0xff] %v597
    %vm612 = vcmask 392448
    %613 = vst.msk [vmem:[%s3] sm:$0xff] %vm612, %v610
    // Predicated region
    $region18: #{encoder_forward.1} parent=1 // pred_check
      _
    $region19: #{encoder_forward.1} parent=1 // pred_check_branch
      %615 = sbr.rel (0) target = $region21
    $region20: #{encoder_forward.1} parent=1 // pred_region
      _
    $region21: #{encoder_forward.1} parent=1 // pred_fallthru
      _
    // Predicated region
    $region22: #{encoder_forward.1} parent=1 // pred_check
      _
    $region23: #{encoder_forward.1} parent=1 // pred_check_branch
      %617 = sbr.rel (0) target = $region25
    $region24: #{encoder_forward.1} parent=1 // pred_region
      _
    $region25: #{encoder_forward.1} parent=1 // pred_fallthru
      _
    %618 = vsyncpa [#allocation3], 1

</llo_original>
